<compile_context>
chip_gen: v5e
topology: v5e:2x2
jax: 0.10.0
libtpu: 0.0.40
codegen_flags: <defaults>
</compile_context>

<pallas_src>
import jax
import jax.numpy as jnp
from jax import lax
from jax.experimental import pallas as pl
from jax.experimental.pallas import tpu as pltpu


def _round_up(x, m):
    return ((x + m - 1) // m) * m


def _tile_and_pad(n, max_tile, align):
    """Pick (padded_total, tile) so tile divides padded_total and blocks are
    either full-extent or (8,128)-friendly."""
    n_al = _round_up(n, align)
    if n_al <= max_tile:
        return n_al, n_al                         # single tile == full extent
    tile = max(128, (max_tile // 128) * 128)      # multi-tile: lane-dense blocks
    n_pad = _round_up(n_al, tile)
    return n_pad, tile


# --------------------------------------------------------------------------
# Stage 1: per-row scores  s[r] = emb[r] . w + b   ->  (1, R_pad) lane-dense
# --------------------------------------------------------------------------
def score_kernel(emb_ref, w_ref, b_ref, out_ref):
    # emb_ref: (tr, D) f32 VMEM | w_ref: (1, D) f32 VMEM | b_ref: (1,) f32 SMEM
    # out_ref: (1, tr) f32 VMEM (lane-dense)
    scores = lax.dot_general(
        w_ref[...], emb_ref[...],
        dimension_numbers=(((1,), (1,)), ((), ())),   # contract over D
        preferred_element_type=jnp.float32)           # -> (1, tr)
    out_ref[...] = scores + b_ref[0]


def compute_scores(emb, w, b):
    R, D = emb.shape
    # Keep each (tr, D) tile around <=2 MiB so double-buffering stays well
    # inside the scoped-VMEM default even on v7x (64 MiB physical).
    max_rows = max(8, min(512, (2 * 1024 * 1024) // max(1, 4 * D)))
    max_rows = max(8, (max_rows // 8) * 8)
    R_pad, tr = _tile_and_pad(R, max_rows, 8)

    emb_p = jnp.pad(emb.astype(jnp.float32), ((0, R_pad - R), (0, 0)))
    w2 = w.reshape(1, D).astype(jnp.float32)
    b1 = b.reshape(1).astype(jnp.float32)

    return pl.pallas_call(
        score_kernel,
        out_shape=jax.ShapeDtypeStruct((1, R_pad), jnp.float32),
        grid_spec=pltpu.PrefetchScalarGridSpec(
            num_scalar_prefetch=0,
            grid=(R_pad // tr,),
            in_specs=[
                pl.BlockSpec((tr, D), lambda i: (i, 0)),            # table rows
                pl.BlockSpec((1, D), lambda i: (0, 0)),             # fc weight
                pl.BlockSpec(memory_space=pltpu.MemorySpace.SMEM),  # bias scalar
            ],
            out_specs=pl.BlockSpec((1, tr), lambda i: (0, i)),
        ),
        compiler_params=pltpu.CompilerParams(
            dimension_semantics=("parallel",)),
    )(emb_p, w2, b1)                                                # (1, R_pad)


# --------------------------------------------------------------------------
# Stage 2: out[b] = s_u[uidx[b]] * s_i[iidx[b]]   ->  (1, B_pad) lane-dense
# --------------------------------------------------------------------------
def gather_mul_kernel(su_ref, si_ref, uidx_ref, iidx_ref, out_ref):
    # su_ref: (1, U_pad) f32 | si_ref: (1, I_pad) f32
    # uidx_ref/iidx_ref: (1, tb) int32 | out_ref: (1, tb) f32
    U = su_ref.shape[1]
    I = si_ref.shape[1]
    tb = uidx_ref.shape[1]
    # One-hot over the *score vectors* (no D factor): O(tb*U + tb*I).
    # NOTE: out-of-range indices gather 0.0 rather than raising (unlike torch).
    onehot_u = (uidx_ref[...] ==
                lax.broadcasted_iota(jnp.int32, (U, tb), 0)).astype(jnp.float32)
    onehot_i = (iidx_ref[...] ==
                lax.broadcasted_iota(jnp.int32, (I, tb), 0)).astype(jnp.float32)
    g_u = jnp.dot(su_ref[...], onehot_u, preferred_element_type=jnp.float32)
    g_i = jnp.dot(si_ref[...], onehot_i, preferred_element_type=jnp.float32)
    out_ref[...] = g_u * g_i


def gmf_forward(user_indices, item_indices, emb_user, emb_item, wu, bu, wi, bi):
    B = user_indices.shape[0]

    # Per-row scores, computed once: O(U*D + I*D).
    s_u = compute_scores(emb_user, wu, bu)     # (1, U_pad)
    s_i = compute_scores(emb_item, wi, bi)     # (1, I_pad)
    U_pad = s_u.shape[1]
    I_pad = s_i.shape[1]

    # Lane-dense batch layout, padded (no silently dropped rows).
    B_pad, tb = _tile_and_pad(B, 512, 128)
    uidx = jnp.zeros((1, B_pad), jnp.int32).at[0, :B].set(
        user_indices.astype(jnp.int32))
    iidx = jnp.zeros((1, B_pad), jnp.int32).at[0, :B].set(
        item_indices.astype(jnp.int32))

    out = pl.pallas_call(
        gather_mul_kernel,
        out_shape=jax.ShapeDtypeStruct((1, B_pad), jnp.float32),
        grid_spec=pltpu.PrefetchScalarGridSpec(
            num_scalar_prefetch=0,
            grid=(B_pad // tb,),
            in_specs=[
                pl.BlockSpec((1, U_pad), lambda b: (0, 0)),   # user scores
                pl.BlockSpec((1, I_pad), lambda b: (0, 0)),   # item scores
                pl.BlockSpec((1, tb), lambda b: (0, b)),      # user indices
                pl.BlockSpec((1, tb), lambda b: (0, b)),      # item indices
            ],
            out_specs=pl.BlockSpec((1, tb), lambda b: (0, b)),
        ),
        compiler_params=pltpu.CompilerParams(
            dimension_semantics=("parallel",)),
    )(s_u, s_i, uidx, iidx)

    return out[0, :B].reshape(B, 1)
    # TODO(synk): for very large vocabularies (U/I >> 10^4) replace the stage-2
    # one-hot with a scalar-prefetch / DMA row gather so the score vectors need
    # not be VMEM-resident either.


if __name__ == "__main__":
    # Small, deterministic problem sizes consistent with the module.
    num_users, num_items, embedding_dim = 32, 64, 32
    batch = 8

    key = jax.random.PRNGKey(0)
    k_eu, k_ei, k_wu, k_bu, k_wi, k_bi, k_ui, k_ii = jax.random.split(key, 8)

    # nn.Embedding init ~ N(0, 1); nn.Linear init ~ U(-1/sqrt(D), 1/sqrt(D)).
    emb_user = jax.random.normal(k_eu, (num_users, embedding_dim), jnp.float32)
    emb_item = jax.random.normal(k_ei, (num_items, embedding_dim), jnp.float32)
    bound = 1.0 / (embedding_dim ** 0.5)
    wu = jax.random.uniform(k_wu, (1, embedding_dim), jnp.float32, -bound, bound)
    bu = jax.random.uniform(k_bu, (1,), jnp.float32, -bound, bound)
    wi = jax.random.uniform(k_wi, (1, embedding_dim), jnp.float32, -bound, bound)
    bi = jax.random.uniform(k_bi, (1,), jnp.float32, -bound, bound)

    user_indices = jax.random.randint(k_ui, (batch,), 0, num_users, jnp.int32)
    item_indices = jax.random.randint(k_ii, (batch,), 0, num_items, jnp.int32)

    out = gmf_forward(user_indices, item_indices, emb_user, emb_item,
                      wu, bu, wi, bi)
    out = jax.block_until_ready(out)

    # Pure-JAX reference for correctness.
    u_ref = emb_user[user_indices]                      # (B, D)
    i_ref = emb_item[item_indices]                      # (B, D)
    user_ref = u_ref @ wu.T + bu                        # (B, 1)
    item_ref = i_ref @ wi.T + bi                        # (B, 1)
    ref = user_ref * item_ref                           # (B, 1)

    assert out.shape == (batch, 1)
    assert jnp.allclose(out, ref, atol=1e-5, rtol=1e-5), (out, ref)
    print("KERNEL_OK")
</pallas_src>

<mosaic_0001>
module attributes {stable_mosaic.version = 11 : i64} {
  func.func @score_kernel(%arg0: i32, %arg1: memref<32x32xf32, #tpu.memory_space<vmem>>, %arg2: memref<1x32xf32, #tpu.memory_space<vmem>>, %arg3: memref<1xf32, #tpu.memory_space<smem>>, %arg4: memref<1x32xf32, #tpu.memory_space<vmem>>) attributes {dimension_semantics = [#tpu.dimension_semantics<parallel>], iteration_bounds = array<i64: 1>, scalar_prefetch = 0 : i64, scratch_operands = 0 : i64, tpu.core_type = #tpu.core_type<tc>, window_params = [{transform_indices = @transform_0, window_bounds = array<i64: 32, 32>}, {pipeline_mode = #tpu.pipeline_mode<synchronous>, transform_indices = @transform_1, window_bounds = array<i64: 1, 32>}, {transform_indices = @transform_2, window_bounds = array<i64: 1>}, {transform_indices = @transform_3, window_bounds = array<i64: 1, 32>}]} {
    %c0 = arith.constant 0 : index
    %c0_0 = arith.constant 0 : index
    %0 = vector.load %arg2[%c0, %c0_0] : memref<1x32xf32, #tpu.memory_space<vmem>>, vector<1x32xf32>
    %c0_1 = arith.constant 0 : index
    %c0_2 = arith.constant 0 : index
    %1 = vector.load %arg1[%c0_1, %c0_2] : memref<32x32xf32, #tpu.memory_space<vmem>>, vector<32x32xf32>
    %cst = arith.constant dense<0.000000e+00> : vector<1x32xf32>
    %2 = tpu.matmul %0, %1, %cst {dimension_numbers = #tpu.dot_dimension_numbers<[1], [1], [0], [0], [0, 0, 1, 0], [], []>} : vector<1x32xf32>, vector<32x32xf32>, vector<1x32xf32> -> vector<1x32xf32>
    %c0_3 = arith.constant 0 : index
    %3 = memref.load %arg3[%c0_3] : memref<1xf32, #tpu.memory_space<smem>>
    %4 = vector.broadcast %3 : f32 to vector<1x32xf32>
    %5 = arith.addf %2, %4 : vector<1x32xf32>
    %c0_4 = arith.constant 0 : index
    %c0_5 = arith.constant 0 : index
    %6 = vector.load %arg4[%c0_4, %c0_5] : memref<1x32xf32, #tpu.memory_space<vmem>>, vector<1x32xf32>
    tpu.vector_store %arg4[%c0_4, %c0_5], %5 {strides = array<i32>} : memref<1x32xf32, #tpu.memory_space<vmem>>, vector<1x32xf32>,
    return
  }
  func.func @transform_0(%arg0: i32) -> (i32, i32) {
    %c0_i32 = arith.constant 0 : i32
    %c0_i32_0 = arith.constant 0 : i32
    return %arg0, %c0_i32 : i32, i32
  }
  func.func @transform_1(%arg0: i32) -> (i32, i32) {
    %c0_i32 = arith.constant 0 : i32
    %c0_i32_0 = arith.constant 0 : i32
    %c0_i32_1 = arith.constant 0 : i32
    return %c0_i32, %c0_i32_0 : i32, i32
  }
  func.func @transform_2(%arg0: i32) -> i32 {
    %c0_i32 = arith.constant 0 : i32
    %c0_i32_0 = arith.constant 0 : i32
    return %c0_i32 : i32
  }
  func.func @transform_3(%arg0: i32) -> (i32, i32) {
    %c0_i32 = arith.constant 0 : i32
    %c0_i32_0 = arith.constant 0 : i32
    return %c0_i32, %arg0 : i32, i32
  }
}

</mosaic_0001>

<llo_original>
// kernel: tpu_custom_call.1
$region0: #{tpu_custom_call.1}
  #allocation0 [shape = 'u32[]', space=smem, size = 0x4, offset = 0x4, fixed_abs, tag = 'smem constant byte address 0x4 - core index']
  #allocation1 [shape = 'u32[72,128]{1,0:T(1,128)}', space=vmem, size = 0x9000, scoped, tag = 'internal scratch']
  #allocation2 [shape = 'f32[1]{0:T(128)S(6)}', space=smem, size = 0x200, scoped, tag = 'scoped memory for tpu_custom_call.1']
  %s0 = inlined_call_operand.hbm [shape: f32[32,32], index: 0, kind: input, shape index: {}]
  %s1 = inlined_call_operand.vmem [shape: f32[1,32], index: 1, kind: input, shape index: {}]
  %s2 = inlined_call_operand.<no memory space> [shape: f32[1], index: 2, kind: input, shape index: {}]
  %s3 = inlined_call_operand.hbm [shape: f32[1,32], index: 3, kind: output, shape index: {}]
  %s4 = sld [smem:[#allocation0]]
  $region26: #{tpu_custom_call.1} parent=0
    _
  %s6 = ssub.s32 1, %s4
  %s7 = scalar_select 0, %s6, %s4
  %8 = sst [smem:[#allocation2]] %s2
  $region1: #{tpu_custom_call.1} parent=0
    #allocation3 [shape = 'u8[16384]{0}', space=vmem, size = 0x4000, scoped, tag = 'input window, operand 0, single buffered']
    #allocation4 [shape = 's32[1]{0}', space=sflag, size = 0x4, scoped, tag = 'scoped memory for tpu_custom_call.1']
    #allocation5 [shape = 's32[1]{0}', space=sflag, size = 0x4, scoped, tag = 'scoped memory for tpu_custom_call.1']
    #allocation6 [shape = 'u8[512]{0}', space=vmem, size = 0x400, scoped, tag = 'output window, operand 0, single buffered']
    %9 = vsyncpa [#allocation4], 0
    %10 = vsyncpa [#allocation5], 0
    // Predicated region
    $region2: #{tpu_custom_call.1} parent=1 // pred_check
      _
    $region3: #{tpu_custom_call.1} parent=1 // pred_check_branch
      %12 = sbr.rel (0) target = $region5
    $region4: #{tpu_custom_call.1} parent=1 // pred_region
      %14 = vsyncadd [#allocation4], 0
      %s15 = sshll.u32 %s0, 4
      %s16 = int_to_ptr.hbm [resolvable:$true] %s15
      %s17 = sshll.u32 [#allocation3], 4
      %s18 = int_to_ptr.vmem [resolvable:$true] %s17
      %23 = dma.hbm_to_vmem [thread:$0]  %s16, 512, %s18, [#allocation4], 128, 128, 8
    $region5: #{tpu_custom_call.1} parent=1 // pred_fallthru
      _
    // Predicated region
    $region6: #{tpu_custom_call.1} parent=1 // pred_check
      _
    $region7: #{tpu_custom_call.1} parent=1 // pred_check_branch
      %25 = sbr.rel (0) target = $region9
    $region8: #{tpu_custom_call.1} parent=1 // pred_region
      _
    $region9: #{tpu_custom_call.1} parent=1 // pred_fallthru
      _
    // Predicated region
    $region10: #{tpu_custom_call.1} parent=1 // pred_check
      _
    $region11: #{tpu_custom_call.1} parent=1 // pred_check_branch
      %27 = sbr.rel (0) target = $region13
    $region12: #{tpu_custom_call.1} parent=1 // pred_region
      _
    $region13: #{tpu_custom_call.1} parent=1 // pred_fallthru
      _
    // Predicated region
    $region14: #{tpu_custom_call.1} parent=1 // pred_check
      _
    $region15: #{tpu_custom_call.1} parent=1 // pred_check_branch
      %29 = sbr.rel (0) target = $region17
    $region16: #{tpu_custom_call.1} parent=1 // pred_region
      %31 = dma.done [#allocation4], 512
    $region17: #{tpu_custom_call.1} parent=1 // pred_fallthru
      _
    %v32 = vld [vmem:[%s1] sm:$0x1]
    %v33 = vld [vmem:[#allocation3] sm:$0xff]
    %v34 = vld [vmem:[#allocation3 + $0x8] sm:$0xff]
    %v35 = vld [vmem:[#allocation3 + $0x10] sm:$0xff]
    %v36 = vld [vmem:[#allocation3 + $0x18] sm:$0xff]
    %s37 = sld [smem:[#allocation2]]
    %v38 = vstv %s37
    %vm39 = vcmask 261120
    %v41 = vsel %vm39, %v32, 0
    %v44 = vsel %vm39, %v33, 0
    %v47 = vsel %vm39, %v34, 0
    %v50 = vsel %vm39, %v35, 0
    %v53 = vsel %vm39, %v36, 0
    %55 = vmatpush.xpose.msra.mxu0 0.0
    %56 = vmatpush.xpose.msra.mxu0 0.0
    %57 = vmatpush.xpose.msra.mxu0 0.0
    %58 = vmatpush.xpose.msra.mxu0 0.0
    %59 = vmatpush.xpose.msra.mxu0 0.0
    %60 = vmatpush.xpose.msra.mxu0 0.0
    %61 = vmatpush.xpose.msra.mxu0 0.0
    %62 = vmatpush.xpose.msra.mxu0 0.0
    %63 = vmatpush.xpose.msra.mxu0 0.0
    %64 = vmatpush.xpose.msra.mxu0 0.0
    %65 = vmatpush.xpose.msra.mxu0 0.0
    %66 = vmatpush.xpose.msra.mxu0 0.0
    %67 = vmatpush.xpose.msra.mxu0 %v53
    %68 = vmatpush.xpose.msra.mxu0 %v50
    %69 = vmatpush.xpose.msra.mxu0 %v47
    %70 = vmatpush.xpose.msra.mxu0 %v44
    %71 = vmatmul.f32.gmra.mxu0 %v41
    %v72 = vpop.f32.mrf.mxu0
    %v73 = vadd.f32 %v38, %v72
    %74 = vdwg.mxu0
    %vm75 = vcmask 253952
    %76 = vst.msk [vmem:[#allocation6] sm:$0x1] %vm75, %v73
    // Predicated region
    $region18: #{tpu_custom_call.1} parent=1 // pred_check
      _
    $region19: #{tpu_custom_call.1} parent=1 // pred_check_branch
      %78 = sbr.rel (0) target = $region21
    $region20: #{tpu_custom_call.1} parent=1 // pred_region
      %80 = vsyncadd [#allocation5], 0
      %s82 = sshll.u32 [#allocation6], 4
      %s83 = int_to_ptr.vmem [resolvable:$true] %s82
      %s84 = sshll.u32 %s3, 4
      %s85 = int_to_ptr.hbm [resolvable:$true] %s84
      %87 = dma.vmem_to_hbm [thread:$0]  %s83, 16, %s85, [#allocation5]
    $region21: #{tpu_custom_call.1} parent=1 // pred_fallthru
      _
    // Predicated region
    $region22: #{tpu_custom_call.1} parent=1 // pred_check
      _
    $region23: #{tpu_custom_call.1} parent=1 // pred_check_branch
      %89 = sbr.rel (0) target = $region25
    $region24: #{tpu_custom_call.1} parent=1 // pred_region
      %91 = dma.done [#allocation5], 16
    $region25: #{tpu_custom_call.1} parent=1 // pred_fallthru
      _
    %92 = vsyncpa [#allocation4], 1
    %93 = vsyncpa [#allocation5], 1

</llo_original>
